<compile_context>
chip_gen: v7x
topology: tpu7x:2x2x1
jax: 0.10.0
libtpu: 0.0.40
codegen_flags: <defaults>
</compile_context>

<pallas_src>
import functools
import math

import jax
import jax.numpy as jnp
from jax.experimental import pallas as pl
from jax.experimental.pallas import tpu as pltpu


def _attention_kernel(xq_ref, xkv_ref, wq_ref, bq_ref, wk_ref, bk_ref,
                      out_ref, attn_ref, *, scale):
    # Block shapes seen by the kernel:
    #   xq_ref  : (1, TQ, D)  query rows of x for this (batch, q-tile)
    #   xkv_ref : (1, S,  D)  full sequence of x for this batch element
    #   wq/wk   : (D, D)      projection weights, (in, out) layout, resident
    #   bq/bk   : (1, D)
    #   out_ref : (1, TQ, D)
    #   attn_ref: (1, TQ, S)
    xq = xq_ref[0]        # (TQ, D), native dtype
    xkv = xkv_ref[0]      # (S, D),  native dtype

    # Q / K projections on the MXU, accumulate in f32.
    q = jnp.dot(xq, wq_ref[...], preferred_element_type=jnp.float32)
    q = q + bq_ref[...].astype(jnp.float32)                       # (TQ, D)
    k = jnp.dot(xkv, wk_ref[...], preferred_element_type=jnp.float32)
    k = k + bk_ref[...].astype(jnp.float32)                       # (S, D)

    # scores = Q K^T / sqrt(D)  -> (TQ, S); contract on D for both operands
    # so the MXU handles the "transpose" (no XLU work).
    scores = jax.lax.dot_general(
        q, k, (((1,), (1,)), ((), ())),
        preferred_element_type=jnp.float32) * scale

    # Numerically stable row-wise softmax.
    m = jnp.max(scores, axis=-1, keepdims=True)
    p = jnp.exp(scores - m)
    denom = jnp.sum(p, axis=-1, keepdims=True)
    attn = p / denom                                              # (TQ, S)

    # output = attn_weights @ x  (the PyTorch module multiplies by x, not V).
    out = jnp.dot(attn, xkv.astype(jnp.float32),
                  preferred_element_type=jnp.float32)             # (TQ, D)

    out_ref[0] = out.astype(out_ref.dtype)
    attn_ref[0] = attn.astype(attn_ref.dtype)


def self_attention_kqv(x, wq, bq, wk, bk, *, block_q=None):
    """x: (B, S, D). wq/wk: (D, D) in (in, out) layout (i.e. PyTorch weight.T).
    bq/bk: (D,). Returns (output (B,S,D), attn_weights (B,S,S))."""
    B, S, D = x.shape
    if block_q is None:
        # Full-sequence query tile for small S; cap the tile for long sequences
        # so 2 pipeline buffers stay well under scoped VMEM on v5e/v7x.
        block_q = S if S <= 512 else 512
    assert S % block_q == 0, "S must be divisible by block_q"
    num_q = S // block_q

    scale = 1.0 / math.sqrt(D)
    bq2 = bq.reshape(1, D)
    bk2 = bk.reshape(1, D)

    kernel = functools.partial(_attention_kernel, scale=scale)

    out, attn = pl.pallas_call(
        kernel,
        out_shape=(
            jax.ShapeDtypeStruct((B, S, D), x.dtype),
            jax.ShapeDtypeStruct((B, S, S), x.dtype),
        ),
        grid=(B, num_q),
        in_specs=[
            # query rows of x for this (batch, q-tile)
            pl.BlockSpec((1, block_q, D), lambda b, qi: (b, qi, 0)),
            # full sequence of x for this batch element (keys / value source)
            pl.BlockSpec((1, S, D), lambda b, qi: (b, 0, 0)),
            # weights / biases: constant index_map -> VMEM-resident
            pl.BlockSpec((D, D), lambda b, qi: (0, 0)),
            pl.BlockSpec((1, D), lambda b, qi: (0, 0)),
            pl.BlockSpec((D, D), lambda b, qi: (0, 0)),
            pl.BlockSpec((1, D), lambda b, qi: (0, 0)),
        ],
        out_specs=(
            pl.BlockSpec((1, block_q, D), lambda b, qi: (b, qi, 0)),
            pl.BlockSpec((1, block_q, S), lambda b, qi: (b, qi, 0)),
        ),
        compiler_params=pltpu.CompilerParams(
            dimension_semantics=("parallel", "parallel")),
    )(x, x, wq, bq2, wk, bk2)
    return out, attn


def _reference(x, wq, bq, wk, bk):
    D = x.shape[-1]
    q = jnp.einsum('bsd,de->bse', x, wq) + bq
    k = jnp.einsum('bsd,de->bse', x, wk) + bk
    scores = jnp.einsum('bqe,bke->bqk', q, k) / math.sqrt(D)
    attn = jax.nn.softmax(scores, axis=-1)
    out = jnp.einsum('bqk,bkd->bqd', attn, x)
    return out, attn


if __name__ == "__main__":
    B, S, D = 2, 8, 32  # batch=2, seq=8, input_len=32
    key = jax.random.PRNGKey(0)
    kx, kwq, kbq, kwk, kbk = jax.random.split(key, 5)

    init = 1.0 / math.sqrt(D)
    x = jax.random.normal(kx, (B, S, D), dtype=jnp.float32)
    wq = init * jax.random.normal(kwq, (D, D), dtype=jnp.float32)
    bq = init * jax.random.normal(kbq, (D,), dtype=jnp.float32)
    wk = init * jax.random.normal(kwk, (D, D), dtype=jnp.float32)
    bk = init * jax.random.normal(kbk, (D,), dtype=jnp.float32)
    # TODO(synk): v_linear is part of the PyTorch module but its result is
    # never used in the returned (output, attn_weights); omitted here.

    out, attn = self_attention_kqv(x, wq, bq, wk, bk)
    out, attn = jax.block_until_ready((out, attn))

    ref_out, ref_attn = _reference(x, wq, bq, wk, bk)
    assert jnp.allclose(out, ref_out, rtol=1e-5, atol=1e-5)
    assert jnp.allclose(attn, ref_attn, rtol=1e-5, atol=1e-5)
    print("KERNEL_OK")
</pallas_src>

<mosaic_0001>
module attributes {stable_mosaic.version = 11 : i64} {
  func.func @_attention_kernel(%arg0: i32, %arg1: i32, %arg2: memref<1x8x32xf32, #tpu.memory_space<vmem>>, %arg3: memref<1x8x32xf32, #tpu.memory_space<vmem>>, %arg4: memref<32x32xf32, #tpu.memory_space<vmem>>, %arg5: memref<1x32xf32, #tpu.memory_space<vmem>>, %arg6: memref<32x32xf32, #tpu.memory_space<vmem>>, %arg7: memref<1x32xf32, #tpu.memory_space<vmem>>, %arg8: memref<1x8x32xf32, #tpu.memory_space<vmem>>, %arg9: memref<1x8x8xf32, #tpu.memory_space<vmem>>) attributes {dimension_semantics = [#tpu.dimension_semantics<parallel>, #tpu.dimension_semantics<parallel>], iteration_bounds = array<i64: 2, 1>, scalar_prefetch = 0 : i64, scratch_operands = 0 : i64, tpu.core_type = #tpu.core_type<tc>, window_params = [{transform_indices = @transform_0, window_bounds = array<i64: 1, 8, 32>}, {transform_indices = @transform_1, window_bounds = array<i64: 1, 8, 32>}, {pipeline_mode = #tpu.pipeline_mode<synchronous>, transform_indices = @transform_2, window_bounds = array<i64: 32, 32>}, {pipeline_mode = #tpu.pipeline_mode<synchronous>, transform_indices = @transform_3, window_bounds = array<i64: 1, 32>}, {pipeline_mode = #tpu.pipeline_mode<synchronous>, transform_indices = @transform_4, window_bounds = array<i64: 32, 32>}, {pipeline_mode = #tpu.pipeline_mode<synchronous>, transform_indices = @transform_5, window_bounds = array<i64: 1, 32>}, {transform_indices = @transform_6, window_bounds = array<i64: 1, 8, 32>}, {transform_indices = @transform_7, window_bounds = array<i64: 1, 8, 8>}]} {
    %c0 = arith.constant 0 : index
    %c0_0 = arith.constant 0 : index
    %c0_1 = arith.constant 0 : index
    %0 = vector.load %arg2[%c0, %c0_0, %c0_1] : memref<1x8x32xf32, #tpu.memory_space<vmem>>, vector<1x8x32xf32>
    %1 = vector.shape_cast %0 : vector<1x8x32xf32> to vector<8x32xf32>
    %c0_2 = arith.constant 0 : index
    %c0_3 = arith.constant 0 : index
    %c0_4 = arith.constant 0 : index
    %2 = vector.load %arg3[%c0_2, %c0_3, %c0_4] : memref<1x8x32xf32, #tpu.memory_space<vmem>>, vector<1x8x32xf32>
    %3 = vector.shape_cast %2 : vector<1x8x32xf32> to vector<8x32xf32>
    %c0_5 = arith.constant 0 : index
    %c0_6 = arith.constant 0 : index
    %4 = vector.load %arg4[%c0_5, %c0_6] : memref<32x32xf32, #tpu.memory_space<vmem>>, vector<32x32xf32>
    %cst = arith.constant dense<0.000000e+00> : vector<8x32xf32>
    %5 = tpu.matmul %1, %4, %cst {dimension_numbers = #tpu.dot_dimension_numbers<[1], [0], [0], [1], [0, 0, 1, 1], [], []>} : vector<8x32xf32>, vector<32x32xf32>, vector<8x32xf32> -> vector<8x32xf32>
    %c0_7 = arith.constant 0 : index
    %c0_8 = arith.constant 0 : index
    %6 = vector.load %arg5[%c0_7, %c0_8] : memref<1x32xf32, #tpu.memory_space<vmem>>, vector<1x32xf32>
    %7 = vector.broadcast %6 : vector<1x32xf32> to vector<8x32xf32>
    %8 = arith.addf %5, %7 : vector<8x32xf32>
    %c0_9 = arith.constant 0 : index
    %c0_10 = arith.constant 0 : index
    %9 = vector.load %arg6[%c0_9, %c0_10] : memref<32x32xf32, #tpu.memory_space<vmem>>, vector<32x32xf32>
    %cst_11 = arith.constant dense<0.000000e+00> : vector<8x32xf32>
    %10 = tpu.matmul %3, %9, %cst_11 {dimension_numbers = #tpu.dot_dimension_numbers<[1], [0], [0], [1], [0, 0, 1, 1], [], []>} : vector<8x32xf32>, vector<32x32xf32>, vector<8x32xf32> -> vector<8x32xf32>
    %c0_12 = arith.constant 0 : index
    %c0_13 = arith.constant 0 : index
    %11 = vector.load %arg7[%c0_12, %c0_13] : memref<1x32xf32, #tpu.memory_space<vmem>>, vector<1x32xf32>
    %12 = vector.broadcast %11 : vector<1x32xf32> to vector<8x32xf32>
    %13 = arith.addf %10, %12 : vector<8x32xf32>
    %cst_14 = arith.constant dense<0.000000e+00> : vector<8x8xf32>
    %14 = tpu.matmul %8, %13, %cst_14 {dimension_numbers = #tpu.dot_dimension_numbers<[1], [1], [0], [0], [0, 0, 1, 0], [], []>} : vector<8x32xf32>, vector<8x32xf32>, vector<8x8xf32> -> vector<8x8xf32>
    %cst_15 = arith.constant 0.176776692 : f32
    %15 = vector.broadcast %cst_15 : f32 to vector<8x8xf32>
    %16 = arith.mulf %14, %15 : vector<8x8xf32>
    %cst_16 = arith.constant dense<0xFF800000> : vector<8xf32>
    %17 = vector.multi_reduction <maximumf>, %16, %cst_16 [1] : vector<8x8xf32> to vector<8xf32>
    %18 = vector.shape_cast %17 : vector<8xf32> to vector<8x1xf32>
    %19 = vector.broadcast %18 : vector<8x1xf32> to vector<8x8xf32>
    %20 = arith.subf %16, %19 : vector<8x8xf32>
    %21 = math.exp %20 : vector<8x8xf32>
    %cst_17 = arith.constant dense<0.000000e+00> : vector<8xf32>
    %22 = vector.multi_reduction <add>, %21, %cst_17 [1] : vector<8x8xf32> to vector<8xf32>
    %23 = vector.shape_cast %22 : vector<8xf32> to vector<8x1xf32>
    %24 = vector.broadcast %23 : vector<8x1xf32> to vector<8x8xf32>
    %25 = arith.divf %21, %24 : vector<8x8xf32>
    %cst_18 = arith.constant dense<0.000000e+00> : vector<8x32xf32>
    %26 = tpu.matmul %25, %3, %cst_18 {dimension_numbers = #tpu.dot_dimension_numbers<[1], [0], [0], [1], [0, 0, 1, 1], [], []>} : vector<8x8xf32>, vector<8x32xf32>, vector<8x32xf32> -> vector<8x32xf32>
    %c0_19 = arith.constant 0 : index
    %c0_20 = arith.constant 0 : index
    %c0_21 = arith.constant 0 : index
    %27 = vector.load %arg8[%c0_19, %c0_20, %c0_21] : memref<1x8x32xf32, #tpu.memory_space<vmem>>, vector<1x8x32xf32>
    %28 = vector.shape_cast %27 : vector<1x8x32xf32> to vector<8x32xf32>
    %29 = vector.shape_cast %26 : vector<8x32xf32> to vector<1x8x32xf32>
    tpu.vector_store %arg8[%c0_19, %c0_20, %c0_21], %29 {strides = array<i32>} : memref<1x8x32xf32, #tpu.memory_space<vmem>>, vector<1x8x32xf32>,
    %c0_22 = arith.constant 0 : index
    %c0_23 = arith.constant 0 : index
    %c0_24 = arith.constant 0 : index
    %30 = vector.load %arg9[%c0_22, %c0_23, %c0_24] : memref<1x8x8xf32, #tpu.memory_space<vmem>>, vector<1x8x8xf32>
    %31 = vector.shape_cast %30 : vector<1x8x8xf32> to vector<8x8xf32>
    %32 = vector.shape_cast %25 : vector<8x8xf32> to vector<1x8x8xf32>
    tpu.vector_store %arg9[%c0_22, %c0_23, %c0_24], %32 {strides = array<i32>} : memref<1x8x8xf32, #tpu.memory_space<vmem>>, vector<1x8x8xf32>,
    return
  }
  func.func @transform_0(%arg0: i32, %arg1: i32) -> (i32, i32, i32) {
    %c0_i32 = arith.constant 0 : i32
    %c0_i32_0 = arith.constant 0 : i32
    return %arg0, %arg1, %c0_i32 : i32, i32, i32
  }
  func.func @transform_1(%arg0: i32, %arg1: i32) -> (i32, i32, i32) {
    %c0_i32 = arith.constant 0 : i32
    %c0_i32_0 = arith.constant 0 : i32
    %c0_i32_1 = arith.constant 0 : i32
    return %arg0, %c0_i32, %c0_i32_0 : i32, i32, i32
  }
  func.func @transform_2(%arg0: i32, %arg1: i32) -> (i32, i32) {
    %c0_i32 = arith.constant 0 : i32
    %c0_i32_0 = arith.constant 0 : i32
    %c0_i32_1 = arith.constant 0 : i32
    return %c0_i32, %c0_i32_0 : i32, i32
  }
  func.func @transform_3(%arg0: i32, %arg1: i32) -> (i32, i32) {
    %c0_i32 = arith.constant 0 : i32
    %c0_i32_0 = arith.constant 0 : i32
    %c0_i32_1 = arith.constant 0 : i32
    return %c0_i32, %c0_i32_0 : i32, i32
  }
  func.func @transform_4(%arg0: i32, %arg1: i32) -> (i32, i32) {
    %c0_i32 = arith.constant 0 : i32
    %c0_i32_0 = arith.constant 0 : i32
    %c0_i32_1 = arith.constant 0 : i32
    return %c0_i32, %c0_i32_0 : i32, i32
  }
  func.func @transform_5(%arg0: i32, %arg1: i32) -> (i32, i32) {
    %c0_i32 = arith.constant 0 : i32
    %c0_i32_0 = arith.constant 0 : i32
    %c0_i32_1 = arith.constant 0 : i32
    return %c0_i32, %c0_i32_0 : i32, i32
  }
  func.func @transform_6(%arg0: i32, %arg1: i32) -> (i32, i32, i32) {
    %c0_i32 = arith.constant 0 : i32
    %c0_i32_0 = arith.constant 0 : i32
    return %arg0, %arg1, %c0_i32 : i32, i32, i32
  }
  func.func @transform_7(%arg0: i32, %arg1: i32) -> (i32, i32, i32) {
    %c0_i32 = arith.constant 0 : i32
    %c0_i32_0 = arith.constant 0 : i32
    return %arg0, %arg1, %c0_i32 : i32, i32, i32
  }
}

</mosaic_0001>

<llo_original>
// kernel: tpu_custom_call.1
$region0: #{tpu_custom_call.1}
  #allocation0 [shape = 'u32[]', space=smem, size = 0x4, offset = 0x4, fixed_abs, tag = 'smem constant byte address 0x4 - core index']
  #allocation1 [shape = 'u32[144,128]{1,0:T(1,128)}', space=vmem, size = 0x12000, scoped, tag = 'internal scratch']
  %s0 = inlined_call_operand.hbm [shape: f32[2,8,32], index: 0, kind: input, shape index: {}]
  %s1 = inlined_call_operand.hbm [shape: f32[2,8,32], index: 1, kind: input, shape index: {}]
  %s2 = inlined_call_operand.hbm [shape: f32[32,32], index: 2, kind: input, shape index: {}]
  %s3 = inlined_call_operand.vmem [shape: f32[1,32], index: 3, kind: input, shape index: {}]
  %s4 = inlined_call_operand.hbm [shape: f32[32,32], index: 4, kind: input, shape index: {}]
  %s5 = inlined_call_operand.vmem [shape: f32[1,32], index: 5, kind: input, shape index: {}]
  %s6 = inlined_call_operand.hbm [shape: f32[2,8,32], index: 6, kind: output, shape index: {0}]
  %s7 = inlined_call_operand.hbm [shape: f32[2,8,8], index: 7, kind: output, shape index: {1}]
  %8 = xla_tuple %s6, %s7
  %s9 = sld [smem:[#allocation0]]
  $region81: #{tpu_custom_call.1} parent=0
    _
  %s11 = ssub.s32 1, %s9
  %s12 = scalar_select 0, %s11, %s9
  $region1: #{tpu_custom_call.1} parent=0
    #allocation2 [shape = 'u8[8192]{0}', space=vmem, size = 0x2000, scoped, tag = 'input window, operand 0']
    #allocation3 [shape = 's32[2]{0}', space=sflag, size = 0x8, scoped, tag = 'scoped memory for tpu_custom_call.1']
    #allocation4 [shape = 's32[2]{0}', space=sflag, size = 0x8, scoped, tag = 'scoped memory for tpu_custom_call.1']
    #allocation5 [shape = 'u8[8192]{0}', space=vmem, size = 0x2000, scoped, tag = 'input window, operand 1']
    #allocation6 [shape = 's32[2]{0}', space=sflag, size = 0x8, scoped, tag = 'scoped memory for tpu_custom_call.1']
    #allocation7 [shape = 'u8[16384]{0}', space=vmem, size = 0x4000, scoped, tag = 'input window, operand 2, single buffered']
    #allocation8 [shape = 'u8[16384]{0}', space=vmem, size = 0x4000, scoped, tag = 'input window, operand 4, single buffered']
    #allocation9 [shape = 's32[1]{0}', space=sflag, size = 0x4, scoped, tag = 'scoped memory for tpu_custom_call.1']
    #allocation10 [shape = 'u8[8192]{0}', space=vmem, size = 0x2000, scoped, tag = 'output window, operand 0']
    #allocation11 [shape = 'u8[8192]{0}', space=vmem, size = 0x2000, scoped, tag = 'output window, operand 1']
    #allocation12 [shape = 's32[2]{0}', space=sflag, size = 0x8, scoped, tag = 'scoped memory for tpu_custom_call.1']
    %13 = vsyncpa [#allocation3], 0
    %s14 = scalar_lea.sflag [#allocation3], 1
    %15 = vsyncpa %s14, 0
    %16 = vsyncpa [#allocation6], 0
    %s17 = scalar_lea.sflag [#allocation6], 1
    %18 = vsyncpa %s17, 0
    %19 = vsyncpa [#allocation9], 0
    %20 = vsyncpa [#allocation4], 0
    %s21 = scalar_lea.sflag [#allocation4], 1
    %22 = vsyncpa %s21, 0
    %23 = vsyncpa [#allocation12], 0
    %s24 = scalar_lea.sflag [#allocation12], 1
    %25 = vsyncpa %s24, 0
    loop: start=0, step=1, limit=4
    $region2: #{tpu_custom_call.1} parent=1 // loop_pre_header
      _
    $region3: #{tpu_custom_call.1} parent=1 // loop_header
      %s27 = sphi 0, %s31
      %p28 = scmp.ge.s32.totalorder %s27, 4
      %s34 = sphi 0, %s46
      %s35 = sphi 0, %s42
      %s36 = sphi 0, %s34
      %s37 = sphi 0, %s35
      %s38 = sphi 0, %s36
      %s39 = sphi 0, %s37
      %s51 = sphi 0, %s53
      %s54 = sphi 0, %s51
      %s55 = sphi 0, %s54
      %s71 = sphi 0, %s55
      %s77 = sphi 0, %s79
      %s80 = sphi 0, %s77
      %s81 = sphi 0, %s80
      %s97 = sphi 0, %s81
      %s101 = sphi 0, %s101
      %s103 = sphi 0, %s101
      %s104 = sphi 0, %s103
      %s118 = sphi 0, %s104
      %s122 = sphi 0, %s122
      %s124 = sphi 0, %s122
      %s125 = sphi 0, %s124
      %s139 = sphi 0, %s125
      %s143 = sphi 0, %s143
      %s145 = sphi 0, %s143
      %s146 = sphi 0, %s145
      %s160 = sphi 0, %s146
      %s164 = sphi 0, %s164
      %s166 = sphi 0, %s164
      %s167 = sphi 0, %s166
      %s181 = sphi 0, %s167
      %s189 = sphi 0, %s191
      %s192 = sphi 0, %s189
      %s193 = sphi 0, %s192
      %s209 = sphi 0, %s193
      %s217 = sphi 0, %s219
      %s220 = sphi 0, %s217
      %s221 = sphi 0, %s220
      %s237 = sphi 0, %s221
    $region4: #{tpu_custom_call.1} parent=1 // loop_header_branch
      %30 = sbr.rel (%p28) target = $region8
    $region5: #{tpu_custom_call.1} parent=1 // loop_body
      %s32 = ssub.s32 %s27, 1
      %s33 = ssub.s32 %s27, 2
      %s40 = sadd.s32 1, %s35
      %p41 = scmp.ge.s32.totalorder %s40, 1
      %s42 = scalar_select %p41, 0, %s40
      %s43 = sadd.s32 1, %s34
      %s44 = scalar_select %p41, %s43, %s34
      %p45 = scmp.ge.s32.totalorder %s44, 2
      %s46 = scalar_select %p45, 0, %s44
      %s47 = ssub.s32 %s34, %s46
      %s48 = ssub.s32 %s35, %s42
      %s49 = sor.u32 %s47, %s48
      %p50 = scmp.eq.s32.totalorder %s49, 0
      %s52 = sadd.s32 %s51, 1
      %s53 = scalar_select %p50, %s51, %s52
      %p56 = pneg %p50
      %p57 = scmp.eq.s32.totalorder %s27, 1
      %p58 = por %p56, %p57
      %p59 = scmp.ne.s32.totalorder %s51, %s54
      %p60 = scmp.eq.s32.totalorder %s27, 0
      %p61 = por %p59, %p60
      %p62 = scmp.ne.s32.totalorder %s51, %s54
      %p63 = scmp.eq.s32.totalorder %s32, 1
      %p64 = por %p62, %p63
      %p65 = scmp.ne.s32.totalorder %s54, %s55
      %p66 = scmp.eq.s32.totalorder %s32, 0
      %p67 = por %p65, %p66
      %p68 = scmp.ne.s32.totalorder %s54, %s55
      %p69 = scmp.eq.s32.totalorder %s33, 1
      %p70 = por %p68, %p69
      %p72 = scmp.ne.s32.totalorder %s55, %s71
      %p73 = scmp.eq.s32.totalorder %s33, 0
      %p74 = por %p72, %p73
      %s75 = ssub.s32 %s34, %s46
      %p76 = scmp.eq.s32.totalorder %s75, 0
      %s78 = sadd.s32 %s77, 1
      %s79 = scalar_select %p76, %s77, %s78
      %p82 = pneg %p76
      %p83 = scmp.eq.s32.totalorder %s27, 1
      %p84 = por %p82, %p83
      %p85 = scmp.ne.s32.totalorder %s77, %s80
      %p86 = scmp.eq.s32.totalorder %s27, 0
      %p87 = por %p85, %p86
      %p88 = scmp.ne.s32.totalorder %s77, %s80
      %p89 = scmp.eq.s32.totalorder %s32, 1
      %p90 = por %p88, %p89
      %p91 = scmp.ne.s32.totalorder %s80, %s81
      %p92 = scmp.eq.s32.totalorder %s32, 0
      %p93 = por %p91, %p92
      %p94 = scmp.ne.s32.totalorder %s80, %s81
      %p95 = scmp.eq.s32.totalorder %s33, 1
      %p96 = por %p94, %p95
      %p98 = scmp.ne.s32.totalorder %s81, %s97
      %p99 = scmp.eq.s32.totalorder %s33, 0
      %p100 = por %p98, %p99
      %s102 = sadd.s32 %s101, 1
      %p105 = scmp.eq.s32.totalorder %s27, 1
      %p106 = scmp.ne.s32.totalorder %s101, %s103
      %p107 = scmp.eq.s32.totalorder %s27, 0
      %p108 = por %p106, %p107
      %p109 = scmp.ne.s32.totalorder %s101, %s103
      %p110 = scmp.eq.s32.totalorder %s32, 1
      %p111 = por %p109, %p110
      %p112 = scmp.ne.s32.totalorder %s103, %s104
      %p113 = scmp.eq.s32.totalorder %s32, 0
      %p114 = por %p112, %p113
      %p115 = scmp.ne.s32.totalorder %s103, %s104
      %p116 = scmp.eq.s32.totalorder %s33, 1
      %p117 = por %p115, %p116
      %p119 = scmp.ne.s32.totalorder %s104, %s118
      %p120 = scmp.eq.s32.totalorder %s33, 0
      %p121 = por %p119, %p120
      %s123 = sadd.s32 %s122, 1
      %p126 = scmp.eq.s32.totalorder %s27, 1
      %p127 = scmp.ne.s32.totalorder %s122, %s124
      %p128 = scmp.eq.s32.totalorder %s27, 0
      %p129 = por %p127, %p128
      %p130 = scmp.ne.s32.totalorder %s122, %s124
      %p131 = scmp.eq.s32.totalorder %s32, 1
      %p132 = por %p130, %p131
      %p133 = scmp.ne.s32.totalorder %s124, %s125
      %p134 = scmp.eq.s32.totalorder %s32, 0
      %p135 = por %p133, %p134
      %p136 = scmp.ne.s32.totalorder %s124, %s125
      %p137 = scmp.eq.s32.totalorder %s33, 1
      %p138 = por %p136, %p137
      %p140 = scmp.ne.s32.totalorder %s125, %s139
      %p141 = scmp.eq.s32.totalorder %s33, 0
      %p142 = por %p140, %p141
      %s144 = sadd.s32 %s143, 1
      %p147 = scmp.eq.s32.totalorder %s27, 1
      %p148 = scmp.ne.s32.totalorder %s143, %s145
      %p149 = scmp.eq.s32.totalorder %s27, 0
      %p150 = por %p148, %p149
      %p151 = scmp.ne.s32.totalorder %s143, %s145
      %p152 = scmp.eq.s32.totalorder %s32, 1
      %p153 = por %p151, %p152
      %p154 = scmp.ne.s32.totalorder %s145, %s146
      %p155 = scmp.eq.s32.totalorder %s32, 0
      %p156 = por %p154, %p155
      %p157 = scmp.ne.s32.totalorder %s145, %s146
      %p158 = scmp.eq.s32.totalorder %s33, 1
      %p159 = por %p157, %p158
      %p161 = scmp.ne.s32.totalorder %s146, %s160
      %p162 = scmp.eq.s32.totalorder %s33, 0
      %p163 = por %p161, %p162
      %s165 = sadd.s32 %s164, 1
      %p168 = scmp.eq.s32.totalorder %s27, 1
      %p169 = scmp.ne.s32.totalorder %s164, %s166
      %p170 = scmp.eq.s32.totalorder %s27, 0
      %p171 = por %p169, %p170
      %p172 = scmp.ne.s32.totalorder %s164, %s166
      %p173 = scmp.eq.s32.totalorder %s32, 1
      %p174 = por %p172, %p173
      %p175 = scmp.ne.s32.totalorder %s166, %s167
      %p176 = scmp.eq.s32.totalorder %s32, 0
      %p177 = por %p175, %p176
      %p178 = scmp.ne.s32.totalorder %s166, %s167
      %p179 = scmp.eq.s32.totalorder %s33, 1
      %p180 = por %p178, %p179
      %p182 = scmp.ne.s32.totalorder %s167, %s181
      %p183 = scmp.eq.s32.totalorder %s33, 0
      %p184 = por %p182, %p183
      %s185 = ssub.s32 %s34, %s46
      %s186 = ssub.s32 %s35, %s42
      %s187 = sor.u32 %s185, %s186
      %p188 = scmp.eq.s32.totalorder %s187, 0
      %s190 = sadd.s32 %s189, 1
      %s191 = scalar_select %p188, %s189, %s190
      %p194 = pneg %p188
      %p195 = scmp.eq.s32.totalorder %s27, 1
      %p196 = por %p194, %p195
      %p197 = scmp.ne.s32.totalorder %s189, %s192
      %p198 = scmp.eq.s32.totalorder %s27, 0
      %p199 = por %p197, %p198
      %p200 = scmp.ne.s32.totalorder %s189, %s192
      %p201 = scmp.eq.s32.totalorder %s32, 1
      %p202 = por %p200, %p201
      %p203 = scmp.ne.s32.totalorder %s192, %s193
      %p204 = scmp.eq.s32.totalorder %s32, 0
      %p205 = por %p203, %p204
      %p206 = scmp.ne.s32.totalorder %s192, %s193
      %p207 = scmp.eq.s32.totalorder %s33, 1
      %p208 = por %p206, %p207
      %p210 = scmp.ne.s32.totalorder %s193, %s209
      %p211 = scmp.eq.s32.totalorder %s33, 0
      %p212 = por %p210, %p211
      %s213 = ssub.s32 %s34, %s46
      %s214 = ssub.s32 %s35, %s42
      %s215 = sor.u32 %s213, %s214
      %p216 = scmp.eq.s32.totalorder %s215, 0
      %s218 = sadd.s32 %s217, 1
      %s219 = scalar_select %p216, %s217, %s218
      %p222 = pneg %p216
      %p223 = scmp.eq.s32.totalorder %s27, 1
      %p224 = por %p222, %p223
      %p225 = scmp.ne.s32.totalorder %s217, %s220
      %p226 = scmp.eq.s32.totalorder %s27, 0
      %p227 = por %p225, %p226
      %p228 = scmp.ne.s32.totalorder %s217, %s220
      %p229 = scmp.eq.s32.totalorder %s32, 1
      %p230 = por %p228, %p229
      %p231 = scmp.ne.s32.totalorder %s220, %s221
      %p232 = scmp.eq.s32.totalorder %s32, 0
      %p233 = por %p231, %p232
      %p234 = scmp.ne.s32.totalorder %s220, %s221
      %p235 = scmp.eq.s32.totalorder %s33, 1
      %p236 = por %p234, %p235
      %p238 = scmp.ne.s32.totalorder %s221, %s237
      %p239 = scmp.eq.s32.totalorder %s33, 0
      %p240 = por %p238, %p239
      %p241 = scmp.le.s32.totalorder 1, %s27
      %p242 = scmp.lt.s32.totalorder %s27, 3
      %p243 = pnand %p241, %p242
      %p244 = pneg %p243
      // Predicated region
      $region9: #{tpu_custom_call.1} parent=5 // pred_check
        _
      $region10: #{tpu_custom_call.1} parent=5 // pred_check_branch
        %246 = sbr.rel (%p243) target = $region12
      $region11: #{tpu_custom_call.1} parent=5 // pred_region
        %s247 = ssub.s32 %s27, 1
        // Predicated region
        $region13: #{tpu_custom_call.1} parent=11 // pred_check
          %p248 = pneg %p114
        $region14: #{tpu_custom_call.1} parent=11 // pred_check_branch
          %250 = sbr.rel (%p248) target = $region16
        $region15: #{tpu_custom_call.1} parent=11 // pred_region
          %s252 = ssub.s32 512, 512
          %253 = vsyncadd [#allocation6], %s252
          %s254 = sshll.u32 [#allocation7], 4
          %s255 = int_to_ptr.vmem [resolvable:$true] %s254
          %260 = dma.hbm_to_vmem [thread:$0]  %s2, 512, %s255, [#allocation6], 128, 128, 8
        $region16: #{tpu_custom_call.1} parent=11 // pred_fallthru
          _
        // Predicated region
        $region17: #{tpu_custom_call.1} parent=11 // pred_check
          %p261 = pneg %p135
        $region18: #{tpu_custom_call.1} parent=11 // pred_check_branch
          %263 = sbr.rel (%p261) target = $region20
        $region19: #{tpu_custom_call.1} parent=11 // pred_region
          _
        $region20: #{tpu_custom_call.1} parent=11 // pred_fallthru
          _
        // Predicated region
        $region21: #{tpu_custom_call.1} parent=11 // pred_check
          %p264 = pneg %p156
        $region22: #{tpu_custom_call.1} parent=11 // pred_check_branch
          %266 = sbr.rel (%p264) target = $region24
        $region23: #{tpu_custom_call.1} parent=11 // pred_region
          %s268 = ssub.s32 512, 512
          %269 = vsyncadd [#allocation9], %s268
          %s270 = sshll.u32 [#allocation8], 4
          %s271 = int_to_ptr.vmem [resolvable:$true] %s270
          %276 = dma.hbm_to_vmem [thread:$0]  %s4, 512, %s271, [#allocation9], 128, 128, 8
        $region24: #{tpu_custom_call.1} parent=11 // pred_fallthru
          _
        // Predicated region
        $region25: #{tpu_custom_call.1} parent=11 // pred_check
          %p277 = pneg %p177
        $region26: #{tpu_custom_call.1} parent=11 // pred_check_branch
          %279 = sbr.rel (%p277) target = $region28
        $region27: #{tpu_custom_call.1} parent=11 // pred_region
          _
        $region28: #{tpu_custom_call.1} parent=11 // pred_fallthru
          _
      $region12: #{tpu_custom_call.1} parent=5 // pred_fallthru
        _
      %p280 = scmp.lt.s32.totalorder %s27, 2
      // Predicated region
      $region29: #{tpu_custom_call.1} parent=5 // pred_check
        %p281 = pneg %p280
      $region30: #{tpu_custom_call.1} parent=5 // pred_check_branch
        %283 = sbr.rel (%p281) target = $region32
      $region31: #{tpu_custom_call.1} parent=5 // pred_region
        // Predicated region
        $region33: #{tpu_custom_call.1} parent=31 // pred_check
          %p284 = pneg %p61
        $region34: #{tpu_custom_call.1} parent=31 // pred_check_branch
          %286 = sbr.rel (%p284) target = $region36
        $region35: #{tpu_custom_call.1} parent=31 // pred_region
          %s287 = sand.u32 %s51, 1
          %s288 = scalar_lea.sflag [#allocation3], %s287
          %s289 = sand.u32 %s51, 1
          %s290 = smul.addr %s289, 8
          %s291 = scalar_lea.vmem [#allocation2], %s290
          %s293 = ssub.s32 128, 128
          %294 = vsyncadd %s288, %s293
          %s295 = sadd.s32 %s35, %s34
          %s296 = smul.addr %s295, 128
          %s297 = scalar_lea.hbm %s0, %s296
          %s299 = sshll.u32 %s291, 4
          %s300 = int_to_ptr.vmem [resolvable:$true] %s299
          %302 = dma.hbm_to_vmem [thread:$0]  %s297, 128, %s300, %s288
        $region36: #{tpu_custom_call.1} parent=31 // pred_fallthru
          _
        // Predicated region
        $region37: #{tpu_custom_call.1} parent=31 // pred_check
          %p303 = pneg %p87
        $region38: #{tpu_custom_call.1} parent=31 // pred_check_branch
          %305 = sbr.rel (%p303) target = $region40
        $region39: #{tpu_custom_call.1} parent=31 // pred_region
          %s306 = sand.u32 %s27, 1
          %s307 = scalar_lea.sflag [#allocation6], %s306
          %s308 = sand.u32 %s77, 1
          %s309 = smul.addr %s308, 8
          %s310 = scalar_lea.vmem [#allocation5], %s309
          %s312 = ssub.s32 128, 128
          %313 = vsyncadd %s307, %s312
          %s314 = smul.addr %s34, 128
          %s315 = scalar_lea.hbm %s1, %s314
          %s317 = sshll.u32 %s310, 4
          %s318 = int_to_ptr.vmem [resolvable:$true] %s317
          %320 = dma.hbm_to_vmem [thread:$0]  %s315, 128, %s318, %s307
        $region40: #{tpu_custom_call.1} parent=31 // pred_fallthru
          _
      $region32: #{tpu_custom_call.1} parent=5 // pred_fallthru
        _
      %p321 = scmp.le.s32.totalorder 1, %s27
      %p322 = scmp.lt.s32.totalorder %s27, 3
      %p323 = pnand %p321, %p322
      %p324 = pneg %p323
      // Predicated region
      $region41: #{tpu_custom_call.1} parent=5 // pred_check
        _
      $region42: #{tpu_custom_call.1} parent=5 // pred_check_branch
        %326 = sbr.rel (%p323) target = $region44
      $region43: #{tpu_custom_call.1} parent=5 // pred_region
        %s327 = ssub.s32 %s27, 1
        %s328 = sand.u32 %s54, 1
        %s329 = scalar_lea.sflag [#allocation3], %s328
        %s330 = sand.u32 %s54, 1
        %s331 = smul.addr %s330, 8
        %s332 = scalar_lea.vmem [#allocation2], %s331
        // Predicated region
        $region45: #{tpu_custom_call.1} parent=43 // pred_check
          %p333 = pneg %p67
        $region46: #{tpu_custom_call.1} parent=43 // pred_check_branch
          %335 = sbr.rel (%p333) target = $region48
        $region47: #{tpu_custom_call.1} parent=43 // pred_region
          %336 = dma.done %s329, 128
        $region48: #{tpu_custom_call.1} parent=43 // pred_fallthru
          _
        %s337 = sand.u32 %s32, 1
        %s338 = scalar_lea.sflag [#allocation6], %s337
        %s339 = sand.u32 %s80, 1
        %s340 = smul.addr %s339, 8
        %s341 = scalar_lea.vmem [#allocation5], %s340
        // Predicated region
        $region49: #{tpu_custom_call.1} parent=43 // pred_check
          %p342 = pneg %p93
        $region50: #{tpu_custom_call.1} parent=43 // pred_check_branch
          %344 = sbr.rel (%p342) target = $region52
        $region51: #{tpu_custom_call.1} parent=43 // pred_region
          %345 = dma.done %s338, 128
        $region52: #{tpu_custom_call.1} parent=43 // pred_fallthru
          _
        // Predicated region
        $region53: #{tpu_custom_call.1} parent=43 // pred_check
          %p346 = pneg %p114
        $region54: #{tpu_custom_call.1} parent=43 // pred_check_branch
          %348 = sbr.rel (%p346) target = $region56
        $region55: #{tpu_custom_call.1} parent=43 // pred_region
          %349 = dma.done [#allocation6], 512
        $region56: #{tpu_custom_call.1} parent=43 // pred_fallthru
          _
        // Predicated region
        $region57: #{tpu_custom_call.1} parent=43 // pred_check
          %p350 = pneg %p156
        $region58: #{tpu_custom_call.1} parent=43 // pred_check_branch
          %352 = sbr.rel (%p350) target = $region60
        $region59: #{tpu_custom_call.1} parent=43 // pred_region
          %353 = dma.done [#allocation9], 512
        $region60: #{tpu_custom_call.1} parent=43 // pred_fallthru
          _
        %s354 = sand.u32 %s54, 1
        %s355 = scalar_lea.sflag [#allocation3], %s354
        %s356 = sand.u32 %s54, 1
        %s357 = smul.addr %s356, 8
        %s358 = scalar_lea.vmem [#allocation2], %s357
        %p359 = pneg %p67
        %p360 = pneg %p64
        %s361 = sand.u32 %s32, 1
        %s362 = scalar_lea.sflag [#allocation6], %s361
        %s363 = sand.u32 %s80, 1
        %s364 = smul.addr %s363, 8
        %s365 = scalar_lea.vmem [#allocation5], %s364
        %p366 = pneg %p93
        %p367 = pneg %p90
        %p368 = pneg %p114
        %p369 = pneg %p111
        %p370 = pneg %p135
        %p371 = pneg %p132
        %p372 = pneg %p156
        %p373 = pneg %p153
        %p374 = pneg %p177
        %p375 = pneg %p174
        %p376 = pneg %p205
        %p377 = pneg %p202
        %s378 = sand.u32 %s192, 1
        %s379 = scalar_lea.sflag [#allocation4], %s378
        %s380 = sand.u32 %s192, 1
        %s381 = smul.addr %s380, 8
        %s382 = scalar_lea.vmem [#allocation10], %s381
        %p383 = pneg %p233
        %p384 = pneg %p230
        %s385 = sand.u32 %s220, 1
        %s386 = scalar_lea.sflag [#allocation12], %s385
        %s387 = sand.u32 %s220, 1
        %s388 = smul.addr %s387, 8
        %s389 = scalar_lea.vmem [#allocation11], %s388
        %v390 = vld [vmem:[%s332] sm:$0xff]
        %v391 = vld [vmem:[%s341] sm:$0xff]
        %v392 = vld [vmem:[#allocation7] sm:$0xff]
        %v393 = vld [vmem:[#allocation7 + $0x8] sm:$0xff]
        %v394 = vld [vmem:[#allocation7 + $0x10] sm:$0xff]
        %v395 = vld [vmem:[#allocation7 + $0x18] sm:$0xff]
        %v396 = vld [vmem:[%s3] sm:$0x1]
        %v398 = vlaneseq
        %v399 = vshrl.u32 %v398, 7
        %v400 = vsub.s32 0, %v399
        %v401 = vrot.slane %v396, %v400
        %vm403 = vcmask 261120
        %v405 = vsel %vm403, %v390, 0
        %407 = vmatprep.subr.mxu0 0.0
        %408 = vmatpush1.msra.mxu0 %v392
        %409 = vmatprep.subr.mxu0 0.0
        %410 = vmatpush1.msra.mxu0 %v393
        %411 = vmatprep.subr.mxu0 0.0
        %412 = vmatpush1.msra.mxu0 %v394
        %413 = vmatprep.subr.mxu0 0.0
        %414 = vmatpush1.msra.mxu0 %v395
        %415 = vmatprep.subr.mxu0 0.0
        %416 = vmatpush1.msra.mxu0 0.0
        %417 = vmatprep.subr.mxu0 0.0
        %418 = vmatpush1.msra.mxu0 0.0
        %419 = vmatprep.subr.mxu0 0.0
        %420 = vmatpush1.msra.mxu0 0.0
        %421 = vmatprep.subr.mxu0 0.0
        %422 = vmatpush1.msra.mxu0 0.0
        %423 = vmatprep.subr.mxu0 0.0
        %424 = vmatpush1.msra.mxu0 0.0
        %425 = vmatprep.subr.mxu0 0.0
        %426 = vmatpush1.msra.mxu0 0.0
        %427 = vmatprep.subr.mxu0 0.0
        %428 = vmatpush1.msra.mxu0 0.0
        %429 = vmatprep.subr.mxu0 0.0
        %430 = vmatpush1.msra.mxu0 0.0
        %431 = vmatprep.subr.mxu0 0.0
        %432 = vmatpush1.msra.mxu0 0.0
        %433 = vmatprep.subr.mxu0 0.0
        %434 = vmatpush1.msra.mxu0 0.0
        %435 = vmatprep.subr.mxu0 0.0
        %436 = vmatpush1.msra.mxu0 0.0
        %437 = vmatprep.subr.mxu0 0.0
        %438 = vmatpush1.msra.mxu0 0.0
        %439 = vmatprep.subr.mxu0 0.0
        %440 = vmatpush1.msra.mxu0 0.0
        %441 = vmatprep.subr.mxu0 0.0
        %442 = vmatpush1.msra.mxu0 0.0
        %443 = vmatprep.subr.mxu0 0.0
        %444 = vmatpush1.msra.mxu0 0.0
        %445 = vmatprep.subr.mxu0 0.0
        %446 = vmatpush1.msra.mxu0 0.0
        %447 = vmatprep.subr.mxu0 0.0
        %448 = vmatpush1.msra.mxu0 0.0
        %449 = vmatprep.subr.mxu0 0.0
        %450 = vmatpush1.msra.mxu0 0.0
        %451 = vmatprep.subr.mxu0 0.0
        %452 = vmatpush1.msra.mxu0 0.0
        %453 = vmatprep.subr.mxu0 0.0
        %454 = vmatpush1.msra.mxu0 0.0
        %455 = vmatprep.subr.mxu0 0.0
        %456 = vmatpush1.msra.mxu0 0.0
        %457 = vmatprep.subr.mxu0 0.0
        %458 = vmatpush1.msra.mxu0 0.0
        %459 = vmatprep.subr.mxu0 0.0
        %460 = vmatpush1.msra.mxu0 0.0
        %461 = vmatprep.subr.mxu0 0.0
        %462 = vmatpush1.msra.mxu0 0.0
        %463 = vmatprep.subr.mxu0 0.0
        %464 = vmatpush1.msra.mxu0 0.0
        %465 = vmatprep.subr.mxu0 0.0
        %466 = vmatpush1.msra.mxu0 0.0
        %467 = vmatprep.subr.mxu0 0.0
        %468 = vmatpush1.msra.mxu0 0.0
        %469 = vmatprep.subr.mxu0 0.0
        %470 = vmatpush1.msra.mxu0 0.0
        %471 = vmatprep.mubr.f32.mxu0 0.0
        %472 = vmatmul.mubr.f32.gmra.mrb[0].mxu0 %v405
        %v473 = vpop.f32.mrb[0].mxu0
        %v474 = vadd.f32 %v401, %v473
        %v475 = vpop.f32.mrb[0].mxu0
        %476 = vdwg.mxu0
        %v477 = vld [vmem:[#allocation8] sm:$0xff]
        %v478 = vld [vmem:[#allocation8 + $0x8] sm:$0xff]
        %v479 = vld [vmem:[#allocation8 + $0x10] sm:$0xff]
        %v480 = vld [vmem:[#allocation8 + $0x18] sm:$0xff]
        %v481 = vld [vmem:[%s5] sm:$0x1]
        %v483 = vlaneseq
        %v484 = vshrl.u32 %v483, 7
        %v485 = vsub.s32 0, %v484
        %v486 = vrot.slane %v481, %v485
        %v489 = vsel %vm403, %v391, 0
        %491 = vmatprep.subr.mxu0 0.0
        %492 = vmatpush1.msra.mxu0 %v477
        %493 = vmatprep.subr.mxu0 0.0
        %494 = vmatpush1.msra.mxu0 %v478
        %495 = vmatprep.subr.mxu0 0.0
        %496 = vmatpush1.msra.mxu0 %v479
        %497 = vmatprep.subr.mxu0 0.0
        %498 = vmatpush1.msra.mxu0 %v480
        %499 = vmatprep.subr.mxu0 0.0
        %500 = vmatpush1.msra.mxu0 0.0
        %501 = vmatprep.subr.mxu0 0.0
        %502 = vmatpush1.msra.mxu0 0.0
        %503 = vmatprep.subr.mxu0 0.0
        %504 = vmatpush1.msra.mxu0 0.0
        %505 = vmatprep.subr.mxu0 0.0
        %506 = vmatpush1.msra.mxu0 0.0
        %507 = vmatprep.subr.mxu0 0.0
        %508 = vmatpush1.msra.mxu0 0.0
        %509 = vmatprep.subr.mxu0 0.0
        %510 = vmatpush1.msra.mxu0 0.0
        %511 = vmatprep.subr.mxu0 0.0
        %512 = vmatpush1.msra.mxu0 0.0
        %513 = vmatprep.subr.mxu0 0.0
        %514 = vmatpush1.msra.mxu0 0.0
        %515 = vmatprep.subr.mxu0 0.0
        %516 = vmatpush1.msra.mxu0 0.0
        %517 = vmatprep.subr.mxu0 0.0
        %518 = vmatpush1.msra.mxu0 0.0
        %519 = vmatprep.subr.mxu0 0.0
        %520 = vmatpush1.msra.mxu0 0.0
        %521 = vmatprep.subr.mxu0 0.0
        %522 = vmatpush1.msra.mxu0 0.0
        %523 = vmatprep.subr.mxu0 0.0
        %524 = vmatpush1.msra.mxu0 0.0
        %525 = vmatprep.subr.mxu0 0.0
        %526 = vmatpush1.msra.mxu0 0.0
        %527 = vmatprep.subr.mxu0 0.0
        %528 = vmatpush1.msra.mxu0 0.0
        %529 = vmatprep.subr.mxu0 0.0
        %530 = vmatpush1.msra.mxu0 0.0
        %531 = vmatprep.subr.mxu0 0.0
        %532 = vmatpush1.msra.mxu0 0.0
        %533 = vmatprep.subr.mxu0 0.0
        %534 = vmatpush1.msra.mxu0 0.0
        %535 = vmatprep.subr.mxu0 0.0
        %536 = vmatpush1.msra.mxu0 0.0
        %537 = vmatprep.subr.mxu0 0.0
        %538 = vmatpush1.msra.mxu0 0.0
        %539 = vmatprep.subr.mxu0 0.0
        %540 = vmatpush1.msra.mxu0 0.0
        %541 = vmatprep.subr.mxu0 0.0
        %542 = vmatpush1.msra.mxu0 0.0
        %543 = vmatprep.subr.mxu0 0.0
        %544 = vmatpush1.msra.mxu0 0.0
        %545 = vmatprep.subr.mxu0 0.0
        %546 = vmatpush1.msra.mxu0 0.0
        %547 = vmatprep.subr.mxu0 0.0
        %548 = vmatpush1.msra.mxu0 0.0
        %549 = vmatprep.subr.mxu0 0.0
        %550 = vmatpush1.msra.mxu0 0.0
        %551 = vmatprep.subr.mxu0 0.0
        %552 = vmatpush1.msra.mxu0 0.0
        %553 = vmatprep.subr.mxu0 0.0
        %554 = vmatpush1.msra.mxu0 0.0
        %555 = vmatprep.mubr.f32.mxu0 0.0
        %556 = vmatmul.mubr.f32.gmra.mrb[0].mxu0 %v489
        %v557 = vpop.f32.mrb[0].mxu0
        %v558 = vadd.f32 %v486, %v557
        %v559 = vpop.f32.mrb[0].mxu0
        %560 = vdwg.mxu0
        %v562 = vsel %vm403, %v474, 0
        %v565 = vsel %vm403, %v558, 0
        %567 = vmatprep.subr.mxu0 0.0
        %568 = vmatpush1.xpose.msra.mxu0 %v565
        %569 = vmatprep.subr.mxu0 0.0
        %570 = vmatpush1.xpose.msra.mxu0 0.0
        %571 = vmatprep.subr.mxu0 0.0
        %572 = vmatpush1.xpose.msra.mxu0 0.0
        %573 = vmatprep.subr.mxu0 0.0
        %574 = vmatpush1.xpose.msra.mxu0 0.0
        %575 = vmatprep.subr.mxu0 0.0
        %576 = vmatpush1.xpose.msra.mxu0 0.0
        %577 = vmatprep.subr.mxu0 0.0
        %578 = vmatpush1.xpose.msra.mxu0 0.0
        %579 = vmatprep.subr.mxu0 0.0
        %580 = vmatpush1.xpose.msra.mxu0 0.0
        %581 = vmatprep.subr.mxu0 0.0
        %582 = vmatpush1.xpose.msra.mxu0 0.0
        %583 = vmatprep.subr.mxu0 0.0
        %584 = vmatpush1.xpose.msra.mxu0 0.0
        %585 = vmatprep.subr.mxu0 0.0
        %586 = vmatpush1.xpose.msra.mxu0 0.0
        %587 = vmatprep.subr.mxu0 0.0
        %588 = vmatpush1.xpose.msra.mxu0 0.0
        %589 = vmatprep.subr.mxu0 0.0
        %590 = vmatpush1.xpose.msra.mxu0 0.0
        %591 = vmatprep.subr.mxu0 0.0
        %592 = vmatpush1.xpose.msra.mxu0 0.0
        %593 = vmatprep.subr.mxu0 0.0
        %594 = vmatpush1.xpose.msra.mxu0 0.0
        %595 = vmatprep.subr.mxu0 0.0
        %596 = vmatpush1.xpose.msra.mxu0 0.0
        %597 = vmatprep.subr.mxu0 0.0
        %598 = vmatpush1.xpose.msra.mxu0 0.0
        %599 = vmatprep.subr.mxu0 0.0
        %600 = vmatpush1.xpose.msra.mxu0 0.0
        %601 = vmatprep.subr.mxu0 0.0
        %602 = vmatpush1.xpose.msra.mxu0 0.0
        %603 = vmatprep.subr.mxu0 0.0
        %604 = vmatpush1.xpose.msra.mxu0 0.0
        %605 = vmatprep.subr.mxu0 0.0
        %606 = vmatpush1.xpose.msra.mxu0 0.0
        %607 = vmatprep.subr.mxu0 0.0
        %608 = vmatpush1.xpose.msra.mxu0 0.0
        %609 = vmatprep.subr.mxu0 0.0
        %610 = vmatpush1.xpose.msra.mxu0 0.0
        %611 = vmatprep.subr.mxu0 0.0
        %612 = vmatpush1.xpose.msra.mxu0 0.0
        %613 = vmatprep.subr.mxu0 0.0
        %614 = vmatpush1.xpose.msra.mxu0 0.0
        %615 = vmatprep.subr.mxu0 0.0
        %616 = vmatpush1.xpose.msra.mxu0 0.0
        %617 = vmatprep.subr.mxu0 0.0
        %618 = vmatpush1.xpose.msra.mxu0 0.0
        %619 = vmatprep.subr.mxu0 0.0
        %620 = vmatpush1.xpose.msra.mxu0 0.0
        %621 = vmatprep.subr.mxu0 0.0
        %622 = vmatpush1.xpose.msra.mxu0 0.0
        %623 = vmatprep.subr.mxu0 0.0
        %624 = vmatpush1.xpose.msra.mxu0 0.0
        %625 = vmatprep.subr.mxu0 0.0
        %626 = vmatpush1.xpose.msra.mxu0 0.0
        %627 = vmatprep.subr.mxu0 0.0
        %628 = vmatpush1.xpose.msra.mxu0 0.0
        %629 = vmatprep.subr.mxu0 0.0
        %630 = vmatpush1.xpose.msra.mxu0 0.0
        %631 = vmatprep.mubr.f32.mxu0 0.0
        %632 = vmatmul.mubr.f32.gmra.mrb[0].mxu0 %v562
        %v633 = vpop.f32.mrb[0].mxu0
        %v634 = vadd.f32 0.0, %v633
        %v635 = vpop.f32.mrb[0].mxu0
        %636 = vdwg.mxu0
        %v637 = vmul.f32 %v634, 0.17677669
        %vm638 = vcmask 64512
        %v639 = vsel %vm638, %v637, -inf
        %640 = vmax.xlane.f32.xlu0 %v639
        %v641 = vpop.xlane.xlu0 %640
        %v642 = vsub.f32 %v637, %v641
        %v643 = vmul.f32 %v642, 1.442695
        %v644 = vpow.pop %v643
        %v645 = vsel %vm638, %v644, 0.0
        %646 = vadd.xlane.f32.xlu0 %v645
        %v647 = vpop.xlane.xlu0 %646
        %v648 = vrcp.pop %v647
        %v649 = vmul.f32 %v644, %v648
        %v651 = vsel %vm638, %v649, 0
        %653 = vmatprep.subr.mxu0 0.0
        %654 = vmatpush1.msra.mxu0 %v391
        %655 = vmatprep.subr.mxu0 0.0
        %656 = vmatpush1.msra.mxu0 0.0
        %657 = vmatprep.subr.mxu0 0.0
        %658 = vmatpush1.msra.mxu0 0.0
        %659 = vmatprep.subr.mxu0 0.0
        %660 = vmatpush1.msra.mxu0 0.0
        %661 = vmatprep.subr.mxu0 0.0
        %662 = vmatpush1.msra.mxu0 0.0
        %663 = vmatprep.subr.mxu0 0.0
        %664 = vmatpush1.msra.mxu0 0.0
        %665 = vmatprep.subr.mxu0 0.0
        %666 = vmatpush1.msra.mxu0 0.0
        %667 = vmatprep.subr.mxu0 0.0
        %668 = vmatpush1.msra.mxu0 0.0
        %669 = vmatprep.subr.mxu0 0.0
        %670 = vmatpush1.msra.mxu0 0.0
        %671 = vmatprep.subr.mxu0 0.0
        %672 = vmatpush1.msra.mxu0 0.0
        %673 = vmatprep.subr.mxu0 0.0
        %674 = vmatpush1.msra.mxu0 0.0
        %675 = vmatprep.subr.mxu0 0.0
        %676 = vmatpush1.msra.mxu0 0.0
        %677 = vmatprep.subr.mxu0 0.0
        %678 = vmatpush1.msra.mxu0 0.0
        %679 = vmatprep.subr.mxu0 0.0
        %680 = vmatpush1.msra.mxu0 0.0
        %681 = vmatprep.subr.mxu0 0.0
        %682 = vmatpush1.msra.mxu0 0.0
        %683 = vmatprep.subr.mxu0 0.0
        %684 = vmatpush1.msra.mxu0 0.0
        %685 = vmatprep.subr.mxu0 0.0
        %686 = vmatpush1.msra.mxu0 0.0
        %687 = vmatprep.subr.mxu0 0.0
        %688 = vmatpush1.msra.mxu0 0.0
        %689 = vmatprep.subr.mxu0 0.0
        %690 = vmatpush1.msra.mxu0 0.0
        %691 = vmatprep.subr.mxu0 0.0
        %692 = vmatpush1.msra.mxu0 0.0
        %693 = vmatprep.subr.mxu0 0.0
        %694 = vmatpush1.msra.mxu0 0.0
        %695 = vmatprep.subr.mxu0 0.0
        %696 = vmatpush1.msra.mxu0 0.0
        %697 = vmatprep.subr.mxu0 0.0
        %698 = vmatpush1.msra.mxu0 0.0
        %699 = vmatprep.subr.mxu0 0.0
        %700 = vmatpush1.msra.mxu0 0.0
        %701 = vmatprep.subr.mxu0 0.0
        %702 = vmatpush1.msra.mxu0 0.0
        %703 = vmatprep.subr.mxu0 0.0
        %704 = vmatpush1.msra.mxu0 0.0
        %705 = vmatprep.subr.mxu0 0.0
        %706 = vmatpush1.msra.mxu0 0.0
        %707 = vmatprep.subr.mxu0 0.0
        %708 = vmatpush1.msra.mxu0 0.0
        %709 = vmatprep.subr.mxu0 0.0
        %710 = vmatpush1.msra.mxu0 0.0
        %711 = vmatprep.subr.mxu0 0.0
        %712 = vmatpush1.msra.mxu0 0.0
        %713 = vmatprep.subr.mxu0 0.0
        %714 = vmatpush1.msra.mxu0 0.0
        %715 = vmatprep.subr.mxu0 0.0
        %716 = vmatpush1.msra.mxu0 0.0
        %717 = vmatprep.mubr.f32.mxu0 0.0
        %718 = vmatmul.mubr.f32.gmra.mrb[0].mxu0 %v651
        %v719 = vpop.f32.mrb[0].mxu0
        %v720 = vadd.f32 0.0, %v719
        %v721 = vpop.f32.mrb[0].mxu0
        %722 = vdwg.mxu0
        %723 = vst.msk [vmem:[%s382] sm:$0xff] %vm403, %v720
        %724 = vst.msk [vmem:[%s389] sm:$0xff] %vm638, %v649
        %s725 = sand.u32 %s192, 1
        %s726 = scalar_lea.sflag [#allocation4], %s725
        %s727 = sand.u32 %s192, 1
        %s728 = smul.addr %s727, 8
        %s729 = scalar_lea.vmem [#allocation10], %s728
        %s730 = sand.u32 %s220, 1
        %s731 = scalar_lea.sflag [#allocation12], %s730
        %s732 = sand.u32 %s220, 1
        %s733 = smul.addr %s732, 8
        %s734 = scalar_lea.vmem [#allocation11], %s733
        // Predicated region
        $region61: #{tpu_custom_call.1} parent=43 // pred_check
          %p735 = pneg %p202
        $region62: #{tpu_custom_call.1} parent=43 // pred_check_branch
          %737 = sbr.rel (%p735) target = $region64
        $region63: #{tpu_custom_call.1} parent=43 // pred_region
          %s739 = ssub.s32 128, 128
          %740 = vsyncadd %s726, %s739
          %s741 = sadd.s32 %s37, %s36
          %s742 = smul.addr %s741, 128
          %s743 = scalar_lea.hbm %s6, %s742
          %s745 = sshll.u32 %s729, 4
          %s746 = int_to_ptr.vmem [resolvable:$true] %s745
          %748 = dma.vmem_to_hbm [thread:$0]  %s746, 128, %s743, %s726
        $region64: #{tpu_custom_call.1} parent=43 // pred_fallthru
          _
        // Predicated region
        $region65: #{tpu_custom_call.1} parent=43 // pred_check
          %p749 = pneg %p230
        $region66: #{tpu_custom_call.1} parent=43 // pred_check_branch
          %751 = sbr.rel (%p749) target = $region68
        $region67: #{tpu_custom_call.1} parent=43 // pred_region
          %s753 = ssub.s32 128, 128
          %754 = vsyncadd %s731, %s753
          %s755 = sadd.s32 %s37, %s36
          %s756 = smul.addr %s755, 128
          %s757 = scalar_lea.hbm %s7, %s756
          %s759 = sshll.u32 %s734, 4
          %s760 = int_to_ptr.vmem [resolvable:$true] %s759
          %762 = dma.vmem_to_hbm [thread:$0]  %s760, 128, %s757, %s731
        $region68: #{tpu_custom_call.1} parent=43 // pred_fallthru
          _
      $region44: #{tpu_custom_call.1} parent=5 // pred_fallthru
        _
      %p763 = scmp.le.s32.totalorder 2, %s27
      // Predicated region
      $region69: #{tpu_custom_call.1} parent=5 // pred_check
        %p764 = pneg %p763
      $region70: #{tpu_custom_call.1} parent=5 // pred_check_branch
        %766 = sbr.rel (%p764) target = $region72
      $region71: #{tpu_custom_call.1} parent=5 // pred_region
        %s767 = ssub.s32 %s27, 2
        // Predicated region
        $region73: #{tpu_custom_call.1} parent=71 // pred_check
          %p768 = pneg %p208
        $region74: #{tpu_custom_call.1} parent=71 // pred_check_branch
          %770 = sbr.rel (%p768) target = $region76
        $region75: #{tpu_custom_call.1} parent=71 // pred_region
          %s771 = sand.u32 %s193, 1
          %s772 = scalar_lea.sflag [#allocation4], %s771
          %s773 = sand.u32 %s193, 1
          %s774 = smul.addr %s773, 8
          %s775 = scalar_lea.vmem [#allocation10], %s774
          %776 = dma.done %s772, 128
        $region76: #{tpu_custom_call.1} parent=71 // pred_fallthru
          _
        // Predicated region
        $region77: #{tpu_custom_call.1} parent=71 // pred_check
          %p777 = pneg %p236
        $region78: #{tpu_custom_call.1} parent=71 // pred_check_branch
          %779 = sbr.rel (%p777) target = $region80
        $region79: #{tpu_custom_call.1} parent=71 // pred_region
          %s780 = sand.u32 %s221, 1
          %s781 = scalar_lea.sflag [#allocation12], %s780
          %s782 = sand.u32 %s221, 1
          %s783 = smul.addr %s782, 8
          %s784 = scalar_lea.vmem [#allocation11], %s783
          %785 = dma.done %s781, 128
        $region80: #{tpu_custom_call.1} parent=71 // pred_fallthru
          _
      $region72: #{tpu_custom_call.1} parent=5 // pred_fallthru
        _
    $region6: #{tpu_custom_call.1} parent=1 // loop_footer
      %s31 = sadd.s32 1, %s27
    $region7: #{tpu_custom_call.1} parent=1 // loop_footer_branch
      %26 = sbr.rel target = $region3
    $region8: #{tpu_custom_call.1} parent=1 // loop_exit
      _
    %786 = vsyncpa [#allocation3], 1
    %s787 = scalar_lea.sflag [#allocation3], 1
    %788 = vsyncpa %s787, 1
    %789 = vsyncpa [#allocation6], 1
    %s790 = scalar_lea.sflag [#allocation6], 1
    %791 = vsyncpa %s790, 1
    %792 = vsyncpa [#allocation9], 1
    %793 = vsyncpa [#allocation4], 1
    %s794 = scalar_lea.sflag [#allocation4], 1
    %795 = vsyncpa %s794, 1
    %796 = vsyncpa [#allocation12], 1
    %s797 = scalar_lea.sflag [#allocation12], 1
    %798 = vsyncpa %s797, 1

</llo_original>
